<compile_context>
chip_gen: v7x
topology: tpu7x:2x2x1
jax: 0.10.0
libtpu: 0.0.40
codegen_flags: <defaults>
</compile_context>

<pallas_src>
import functools

import jax
import jax.numpy as jnp
from jax.experimental import pallas as pl
from jax.experimental.pallas import tpu as pltpu

N_HIDDEN = 30
H_PAD = 32  # hidden dim padded to a multiple of the 8-sublane tile


def regression_net_kernel(x_ref, w1_ref, b1_ref, w2_ref, b2_ref, w3_ref, b3_ref,
                          o_ref, *, compute_dtype):
    """One batch tile. Batch on lanes, features on sublanes.

    x_ref : (1, T) f32            input slice (T batch elements on lanes)
    w1_ref: (H, 1) f32            b1_ref: (H, 1) f32
    w2_ref: (H, H) compute_dtype  b2_ref: (H, 1) f32
    w3_ref: (H, 1) f32            b3_ref: (1, 1) f32
    o_ref : (1, T) f32
    """
    x = x_ref[...]                                                    # (1, T) f32

    # fc1 (in_features=1): K=1 "matmul" == outer product -> VPU broadcast mul.
    # Pre-activation in f32, tanh (EUP) in compute_dtype (bf16 on v6e/v7x).
    pre1 = w1_ref[...] * x + b1_ref[...]                              # (H, T) f32
    h1 = jnp.tanh(pre1.astype(compute_dtype))                         # (H, T)

    # fc2 (HxH): the only real matmul -> MXU, f32 accumulate.
    pre2 = jnp.dot(w2_ref[...], h1, preferred_element_type=jnp.float32) + b2_ref[...]
    h2 = jnp.tanh(pre2.astype(compute_dtype))                         # (H, T)

    # fc3 (out_features=1): multiply + sublane (XLU) reduce; promotes to f32.
    out = jnp.sum(w3_ref[...] * h2, axis=0, keepdims=True) + b3_ref[...]  # (1, T) f32
    o_ref[...] = out.astype(o_ref.dtype)


def _select_compute_dtype():
    """bf16 tanh/activations on v6e/v7x (bf16 EUP/VPU); f32 on v5e and older."""
    try:
        kind = jax.devices()[0].device_kind.lower()
    except Exception:
        return jnp.float32
    if "v6" in kind or "v7" in kind:
        return jnp.bfloat16
    return jnp.float32


def _pad_hidden(params, h_pad=H_PAD):
    """Zero-pad hidden dim 30 -> h_pad. Mathematically inert."""
    h = params["w1"].shape[0]
    p = h_pad - h
    assert p >= 0
    return {
        "w1": jnp.pad(params["w1"], ((0, p), (0, 0))),
        "b1": jnp.pad(params["b1"], ((0, p), (0, 0))),
        "w2": jnp.pad(params["w2"], ((0, p), (0, p))),
        "b2": jnp.pad(params["b2"], ((0, p), (0, 0))),
        "w3": jnp.pad(params["w3"], ((0, p), (0, 0))),
        "b3": params["b3"],
    }


def regression_net(x, params, *, tile_n=2048):
    """x: (N, 1) float32 -> (N, 1) float32."""
    n = x.shape[0]
    compute_dtype = _select_compute_dtype()

    # --- tile size selection -------------------------------------------------
    n_128 = ((n + 127) // 128) * 128
    tile_n = max(128, (min(tile_n, n_128) // 128) * 128)   # clamp to padded batch
    # Prefer >= 2 grid steps so the "parallel" axis can shard across both v7x
    # TensorCores (harmless elsewhere: per-step overhead is ~0.35 us).
    if n_128 >= 2 * 128 and tile_n > n_128 // 2:
        tile_n = max(128, ((n_128 // 2) // 128) * 128)
    n_pad = ((n + tile_n - 1) // tile_n) * tile_n

    # --- wrapper-side layout plumbing ---------------------------------------
    x_row = jnp.pad(x[:, 0].astype(jnp.float32), (0, n_pad - n)).reshape(1, -1)

    pp = _pad_hidden(params)
    w1, b1, b2, w3, b3 = pp["w1"], pp["b1"], pp["b2"], pp["w3"], pp["b3"]
    w2 = pp["w2"].astype(compute_dtype)   # bf16 weights for a 1-pass MXU on v6e/v7x

    def resident(a):
        # Full-array block, constant index_map -> stays in VMEM, never re-DMA'd.
        return pl.BlockSpec(a.shape, lambda i: (0, 0))

    kernel = functools.partial(regression_net_kernel, compute_dtype=compute_dtype)

    grid = (n_pad // tile_n,)
    out_row = pl.pallas_call(
        kernel,
        out_shape=jax.ShapeDtypeStruct((1, n_pad), jnp.float32),
        grid_spec=pltpu.PrefetchScalarGridSpec(
            num_scalar_prefetch=0,
            grid=grid,
            in_specs=[
                pl.BlockSpec((1, tile_n), lambda i: (0, i)),   # x: tiled along lanes
                resident(w1), resident(b1),
                resident(w2), resident(b2),
                resident(w3), resident(b3),
            ],
            out_specs=pl.BlockSpec((1, tile_n), lambda i: (0, i)),
        ),
        compiler_params=pltpu.CompilerParams(
            dimension_semantics=("parallel",),   # embarrassingly parallel over batch
        ),
    )(x_row, w1, b1, w2, b2, w3, b3)

    return out_row[0, :n].reshape(n, 1)


def init_params(key, n_hidden):
    # PyTorch Linear init: U(-1/sqrt(fan_in), 1/sqrt(fan_in)); stored in kernel
    # layout (weights (out, in); biases as columns; w3 stored as (H, 1)).
    keys = jax.random.split(key, 6)

    def lin(kw, kb, fan_in, fan_out):
        bound = 1.0 / jnp.sqrt(float(fan_in))
        w = jax.random.uniform(kw, (fan_out, fan_in), jnp.float32, -bound, bound)
        b = jax.random.uniform(kb, (fan_out, 1), jnp.float32, -bound, bound)
        return w, b

    w1, b1 = lin(keys[0], keys[1], 1, n_hidden)         # (H, 1), (H, 1)
    w2, b2 = lin(keys[2], keys[3], n_hidden, n_hidden)  # (H, H), (H, 1)
    w3t, b3 = lin(keys[4], keys[5], n_hidden, 1)        # (1, H), (1, 1)
    return {"w1": w1, "b1": b1, "w2": w2, "b2": b2, "w3": w3t.T, "b3": b3}


def regression_net_ref(x, params):
    """Pure-JAX f32 reference, mathematically identical to the PyTorch forward."""
    h1 = jnp.tanh(x * params["w1"].T + params["b1"].T)                # Linear(1,30), K=1
    h2 = jnp.tanh(h1 @ params["w2"].T + params["b2"].T)               # Linear(30,30)
    return jnp.sum(h2 * params["w3"].T, axis=1, keepdims=True) + params["b3"]  # Linear(30,1)


if __name__ == "__main__":
    key = jax.random.PRNGKey(0)
    k_x, k_p = jax.random.split(key)

    # Batch deliberately NOT a multiple of 128 to exercise the padded tail;
    # tile selection yields multiple grid steps.
    batch = 300
    x = jax.random.normal(k_x, (batch, 1), jnp.float32)
    params = init_params(k_p, N_HIDDEN)

    out = regression_net(x, params)
    out = jax.block_until_ready(out)

    ref = regression_net_ref(x, params)
    assert out.shape == (batch, 1)

    # Tolerance: tight for the f32 path (v5e); relaxed for bf16 tanh/activations
    # on v6e/v7x (bf16 has ~3 decimal digits of mantissa).
    if _select_compute_dtype() == jnp.bfloat16:
        atol, rtol = 1e-2, 1e-2
    else:
        atol, rtol = 1e-4, 1e-4
    max_err = float(jnp.max(jnp.abs(out - ref)))
    assert jnp.allclose(out, ref, atol=atol, rtol=rtol), f"max abs err {max_err}"

    print("KERNEL_OK")
</pallas_src>

<mosaic_0001>
module attributes {stable_mosaic.version = 11 : i64} {
  func.func @regression_net_kernel(%arg0: i32, %arg1: memref<1x128xf32, #tpu.memory_space<vmem>>, %arg2: memref<32x1xf32, #tpu.memory_space<vmem>>, %arg3: memref<32x1xf32, #tpu.memory_space<vmem>>, %arg4: memref<32x32xf32, #tpu.memory_space<vmem>>, %arg5: memref<32x1xf32, #tpu.memory_space<vmem>>, %arg6: memref<32x1xf32, #tpu.memory_space<vmem>>, %arg7: memref<1x1xf32, #tpu.memory_space<vmem>>, %arg8: memref<1x128xf32, #tpu.memory_space<vmem>>) attributes {dimension_semantics = [#tpu.dimension_semantics<parallel>], iteration_bounds = array<i64: 3>, scalar_prefetch = 0 : i64, scratch_operands = 0 : i64, tpu.core_type = #tpu.core_type<tc>, window_params = [{transform_indices = @transform_0, window_bounds = array<i64: 1, 128>}, {pipeline_mode = #tpu.pipeline_mode<synchronous>, transform_indices = @transform_1, window_bounds = array<i64: 32, 1>}, {pipeline_mode = #tpu.pipeline_mode<synchronous>, transform_indices = @transform_2, window_bounds = array<i64: 32, 1>}, {pipeline_mode = #tpu.pipeline_mode<synchronous>, transform_indices = @transform_3, window_bounds = array<i64: 32, 32>}, {pipeline_mode = #tpu.pipeline_mode<synchronous>, transform_indices = @transform_4, window_bounds = array<i64: 32, 1>}, {pipeline_mode = #tpu.pipeline_mode<synchronous>, transform_indices = @transform_5, window_bounds = array<i64: 32, 1>}, {pipeline_mode = #tpu.pipeline_mode<synchronous>, transform_indices = @transform_6, window_bounds = array<i64: 1, 1>}, {transform_indices = @transform_7, window_bounds = array<i64: 1, 128>}]} {
    %c0 = arith.constant 0 : index
    %c0_0 = arith.constant 0 : index
    %0 = vector.load %arg1[%c0, %c0_0] : memref<1x128xf32, #tpu.memory_space<vmem>>, vector<1x128xf32>
    %c0_1 = arith.constant 0 : index
    %c0_2 = arith.constant 0 : index
    %1 = vector.load %arg2[%c0_1, %c0_2] : memref<32x1xf32, #tpu.memory_space<vmem>>, vector<32x1xf32>
    %2 = vector.broadcast %1 : vector<32x1xf32> to vector<32x128xf32>
    %3 = vector.broadcast %0 : vector<1x128xf32> to vector<32x128xf32>
    %4 = arith.mulf %2, %3 : vector<32x128xf32>
    %c0_3 = arith.constant 0 : index
    %c0_4 = arith.constant 0 : index
    %5 = vector.load %arg3[%c0_3, %c0_4] : memref<32x1xf32, #tpu.memory_space<vmem>>, vector<32x1xf32>
    %6 = vector.broadcast %5 : vector<32x1xf32> to vector<32x128xf32>
    %7 = arith.addf %4, %6 : vector<32x128xf32>
    %8 = math.tanh %7 : vector<32x128xf32>
    %c0_5 = arith.constant 0 : index
    %c0_6 = arith.constant 0 : index
    %9 = vector.load %arg4[%c0_5, %c0_6] : memref<32x32xf32, #tpu.memory_space<vmem>>, vector<32x32xf32>
    %cst = arith.constant dense<0.000000e+00> : vector<32x128xf32>
    %10 = tpu.matmul %9, %8, %cst {dimension_numbers = #tpu.dot_dimension_numbers<[1], [0], [0], [1], [0, 0, 1, 1], [], []>} : vector<32x32xf32>, vector<32x128xf32>, vector<32x128xf32> -> vector<32x128xf32>
    %c0_7 = arith.constant 0 : index
    %c0_8 = arith.constant 0 : index
    %11 = vector.load %arg5[%c0_7, %c0_8] : memref<32x1xf32, #tpu.memory_space<vmem>>, vector<32x1xf32>
    %12 = vector.broadcast %11 : vector<32x1xf32> to vector<32x128xf32>
    %13 = arith.addf %10, %12 : vector<32x128xf32>
    %14 = math.tanh %13 : vector<32x128xf32>
    %c0_9 = arith.constant 0 : index
    %c0_10 = arith.constant 0 : index
    %15 = vector.load %arg6[%c0_9, %c0_10] : memref<32x1xf32, #tpu.memory_space<vmem>>, vector<32x1xf32>
    %16 = vector.broadcast %15 : vector<32x1xf32> to vector<32x128xf32>
    %17 = arith.mulf %16, %14 : vector<32x128xf32>
    %cst_11 = arith.constant dense<0.000000e+00> : vector<128xf32>
    %18 = vector.multi_reduction <add>, %17, %cst_11 [0] : vector<32x128xf32> to vector<128xf32>
    %19 = vector.shape_cast %18 : vector<128xf32> to vector<1x128xf32>
    %c0_12 = arith.constant 0 : index
    %c0_13 = arith.constant 0 : index
    %20 = vector.load %arg7[%c0_12, %c0_13] : memref<1x1xf32, #tpu.memory_space<vmem>>, vector<1x1xf32>
    %21 = vector.broadcast %20 : vector<1x1xf32> to vector<1x128xf32>
    %22 = arith.addf %19, %21 : vector<1x128xf32>
    %c0_14 = arith.constant 0 : index
    %c0_15 = arith.constant 0 : index
    %23 = vector.load %arg8[%c0_14, %c0_15] : memref<1x128xf32, #tpu.memory_space<vmem>>, vector<1x128xf32>
    tpu.vector_store %arg8[%c0_14, %c0_15], %22 {strides = array<i32>} : memref<1x128xf32, #tpu.memory_space<vmem>>, vector<1x128xf32>,
    return
  }
  func.func @transform_0(%arg0: i32) -> (i32, i32) {
    %c0_i32 = arith.constant 0 : i32
    %c0_i32_0 = arith.constant 0 : i32
    return %c0_i32, %arg0 : i32, i32
  }
  func.func @transform_1(%arg0: i32) -> (i32, i32) {
    %c0_i32 = arith.constant 0 : i32
    %c0_i32_0 = arith.constant 0 : i32
    %c0_i32_1 = arith.constant 0 : i32
    return %c0_i32, %c0_i32_0 : i32, i32
  }
  func.func @transform_2(%arg0: i32) -> (i32, i32) {
    %c0_i32 = arith.constant 0 : i32
    %c0_i32_0 = arith.constant 0 : i32
    %c0_i32_1 = arith.constant 0 : i32
    return %c0_i32, %c0_i32_0 : i32, i32
  }
  func.func @transform_3(%arg0: i32) -> (i32, i32) {
    %c0_i32 = arith.constant 0 : i32
    %c0_i32_0 = arith.constant 0 : i32
    %c0_i32_1 = arith.constant 0 : i32
    return %c0_i32, %c0_i32_0 : i32, i32
  }
  func.func @transform_4(%arg0: i32) -> (i32, i32) {
    %c0_i32 = arith.constant 0 : i32
    %c0_i32_0 = arith.constant 0 : i32
    %c0_i32_1 = arith.constant 0 : i32
    return %c0_i32, %c0_i32_0 : i32, i32
  }
  func.func @transform_5(%arg0: i32) -> (i32, i32) {
    %c0_i32 = arith.constant 0 : i32
    %c0_i32_0 = arith.constant 0 : i32
    %c0_i32_1 = arith.constant 0 : i32
    return %c0_i32, %c0_i32_0 : i32, i32
  }
  func.func @transform_6(%arg0: i32) -> (i32, i32) {
    %c0_i32 = arith.constant 0 : i32
    %c0_i32_0 = arith.constant 0 : i32
    %c0_i32_1 = arith.constant 0 : i32
    return %c0_i32, %c0_i32_0 : i32, i32
  }
  func.func @transform_7(%arg0: i32) -> (i32, i32) {
    %c0_i32 = arith.constant 0 : i32
    %c0_i32_0 = arith.constant 0 : i32
    return %c0_i32, %arg0 : i32, i32
  }
}

</mosaic_0001>

<llo_original>
// kernel: tpu_custom_call.1
$region0: #{tpu_custom_call.1}
  #allocation0 [shape = 'u32[]', space=smem, size = 0x4, offset = 0x4, fixed_abs, tag = 'smem constant byte address 0x4 - core index']
  #allocation1 [shape = 'u32[144,128]{1,0:T(1,128)}', space=vmem, size = 0x12000, scoped, tag = 'internal scratch']
  #allocation2 [shape = 'f32[1,1]{1,0:T(1,128)S(1)}', space=vmem, size = 0x200, scoped, tag = 'scoped memory for tpu_custom_call.1']
  %s0 = inlined_call_operand.vmem [shape: f32[1,384], index: 0, kind: input, shape index: {}]
  %s1 = inlined_call_operand.vmem [shape: f32[32,1], index: 1, kind: input, shape index: {}]
  %s2 = inlined_call_operand.vmem [shape: f32[32,1], index: 2, kind: input, shape index: {}]
  %s3 = inlined_call_operand.vmem [shape: f32[32,32], index: 3, kind: input, shape index: {}]
  %s4 = inlined_call_operand.vmem [shape: f32[32,1], index: 4, kind: input, shape index: {}]
  %s5 = inlined_call_operand.vmem [shape: f32[32,1], index: 5, kind: input, shape index: {}]
  %s6 = inlined_call_operand.<no memory space> [shape: f32[1,1], index: 6, kind: input, shape index: {}]
  %s7 = inlined_call_operand.hbm [shape: f32[1,384], index: 7, kind: output, shape index: {}]
  %s8 = sld [smem:[#allocation0]]
  $region61: #{tpu_custom_call.1} parent=0
    _
  %s10 = ssub.s32 1, %s8
  %s11 = scalar_select 0, %s10, %s8
  %v12 = vstv %s6
  %13 = vst [vmem:[#allocation2] sm:$0x1] %v12
  $region1: #{tpu_custom_call.1} parent=0
    #allocation3 [shape = 'u8[1024]{0}', space=vmem, size = 0x400, scoped, tag = 'output window, operand 0']
    #allocation4 [shape = 's32[2]{0}', space=sflag, size = 0x8, scoped, tag = 'scoped memory for tpu_custom_call.1']
    %14 = vsyncpa [#allocation4], 0
    %s15 = scalar_lea.sflag [#allocation4], 1
    %16 = vsyncpa %s15, 0
    loop: start=0, step=1, limit=5
    $region2: #{tpu_custom_call.1} parent=1 // loop_pre_header
      _
    $region3: #{tpu_custom_call.1} parent=1 // loop_header
      %s18 = sphi 0, %s22
      %p19 = scmp.ge.s32.totalorder %s18, 5
      %s28 = sphi 0, %s30
      %s31 = sphi 0, %s28
      %s32 = sphi 0, %s31
      %s48 = sphi 0, %s32
      %s52 = sphi 0, %s52
      %s54 = sphi 0, %s52
      %s55 = sphi 0, %s54
      %s69 = sphi 0, %s55
      %s73 = sphi 0, %s73
      %s75 = sphi 0, %s73
      %s76 = sphi 0, %s75
      %s90 = sphi 0, %s76
      %s94 = sphi 0, %s94
      %s96 = sphi 0, %s94
      %s97 = sphi 0, %s96
      %s111 = sphi 0, %s97
      %s115 = sphi 0, %s115
      %s117 = sphi 0, %s115
      %s118 = sphi 0, %s117
      %s132 = sphi 0, %s118
      %s136 = sphi 0, %s136
      %s138 = sphi 0, %s136
      %s139 = sphi 0, %s138
      %s153 = sphi 0, %s139
      %s157 = sphi 0, %s157
      %s159 = sphi 0, %s157
      %s160 = sphi 0, %s159
      %s174 = sphi 0, %s160
      %s180 = sphi 0, %s182
      %s183 = sphi 0, %s180
      %s184 = sphi 0, %s183
      %s200 = sphi 0, %s184
    $region4: #{tpu_custom_call.1} parent=1 // loop_header_branch
      %21 = sbr.rel (%p19) target = $region8
    $region5: #{tpu_custom_call.1} parent=1 // loop_body
      %s23 = ssub.s32 %s18, 1
      %s24 = ssub.s32 %s18, 2
      %s25 = sadd.s32 %s18, 1
      %s26 = ssub.s32 %s18, %s25
      %p27 = scmp.eq.s32.totalorder %s26, 0
      %s29 = sadd.s32 %s28, 1
      %s30 = scalar_select %p27, %s28, %s29
      %p33 = pneg %p27
      %p34 = scmp.eq.s32.totalorder %s18, 2
      %p35 = por %p33, %p34
      %p36 = scmp.ne.s32.totalorder %s28, %s31
      %p37 = scmp.eq.s32.totalorder %s18, 0
      %p38 = por %p36, %p37
      %p39 = scmp.ne.s32.totalorder %s28, %s31
      %p40 = scmp.eq.s32.totalorder %s23, 2
      %p41 = por %p39, %p40
      %p42 = scmp.ne.s32.totalorder %s31, %s32
      %p43 = scmp.eq.s32.totalorder %s23, 0
      %p44 = por %p42, %p43
      %p45 = scmp.ne.s32.totalorder %s31, %s32
      %p46 = scmp.eq.s32.totalorder %s24, 2
      %p47 = por %p45, %p46
      %p49 = scmp.ne.s32.totalorder %s32, %s48
      %p50 = scmp.eq.s32.totalorder %s24, 0
      %p51 = por %p49, %p50
      %s53 = sadd.s32 %s52, 1
      %p56 = scmp.eq.s32.totalorder %s18, 2
      %p57 = scmp.ne.s32.totalorder %s52, %s54
      %p58 = scmp.eq.s32.totalorder %s18, 0
      %p59 = por %p57, %p58
      %p60 = scmp.ne.s32.totalorder %s52, %s54
      %p61 = scmp.eq.s32.totalorder %s23, 2
      %p62 = por %p60, %p61
      %p63 = scmp.ne.s32.totalorder %s54, %s55
      %p64 = scmp.eq.s32.totalorder %s23, 0
      %p65 = por %p63, %p64
      %p66 = scmp.ne.s32.totalorder %s54, %s55
      %p67 = scmp.eq.s32.totalorder %s24, 2
      %p68 = por %p66, %p67
      %p70 = scmp.ne.s32.totalorder %s55, %s69
      %p71 = scmp.eq.s32.totalorder %s24, 0
      %p72 = por %p70, %p71
      %s74 = sadd.s32 %s73, 1
      %p77 = scmp.eq.s32.totalorder %s18, 2
      %p78 = scmp.ne.s32.totalorder %s73, %s75
      %p79 = scmp.eq.s32.totalorder %s18, 0
      %p80 = por %p78, %p79
      %p81 = scmp.ne.s32.totalorder %s73, %s75
      %p82 = scmp.eq.s32.totalorder %s23, 2
      %p83 = por %p81, %p82
      %p84 = scmp.ne.s32.totalorder %s75, %s76
      %p85 = scmp.eq.s32.totalorder %s23, 0
      %p86 = por %p84, %p85
      %p87 = scmp.ne.s32.totalorder %s75, %s76
      %p88 = scmp.eq.s32.totalorder %s24, 2
      %p89 = por %p87, %p88
      %p91 = scmp.ne.s32.totalorder %s76, %s90
      %p92 = scmp.eq.s32.totalorder %s24, 0
      %p93 = por %p91, %p92
      %s95 = sadd.s32 %s94, 1
      %p98 = scmp.eq.s32.totalorder %s18, 2
      %p99 = scmp.ne.s32.totalorder %s94, %s96
      %p100 = scmp.eq.s32.totalorder %s18, 0
      %p101 = por %p99, %p100
      %p102 = scmp.ne.s32.totalorder %s94, %s96
      %p103 = scmp.eq.s32.totalorder %s23, 2
      %p104 = por %p102, %p103
      %p105 = scmp.ne.s32.totalorder %s96, %s97
      %p106 = scmp.eq.s32.totalorder %s23, 0
      %p107 = por %p105, %p106
      %p108 = scmp.ne.s32.totalorder %s96, %s97
      %p109 = scmp.eq.s32.totalorder %s24, 2
      %p110 = por %p108, %p109
      %p112 = scmp.ne.s32.totalorder %s97, %s111
      %p113 = scmp.eq.s32.totalorder %s24, 0
      %p114 = por %p112, %p113
      %s116 = sadd.s32 %s115, 1
      %p119 = scmp.eq.s32.totalorder %s18, 2
      %p120 = scmp.ne.s32.totalorder %s115, %s117
      %p121 = scmp.eq.s32.totalorder %s18, 0
      %p122 = por %p120, %p121
      %p123 = scmp.ne.s32.totalorder %s115, %s117
      %p124 = scmp.eq.s32.totalorder %s23, 2
      %p125 = por %p123, %p124
      %p126 = scmp.ne.s32.totalorder %s117, %s118
      %p127 = scmp.eq.s32.totalorder %s23, 0
      %p128 = por %p126, %p127
      %p129 = scmp.ne.s32.totalorder %s117, %s118
      %p130 = scmp.eq.s32.totalorder %s24, 2
      %p131 = por %p129, %p130
      %p133 = scmp.ne.s32.totalorder %s118, %s132
      %p134 = scmp.eq.s32.totalorder %s24, 0
      %p135 = por %p133, %p134
      %s137 = sadd.s32 %s136, 1
      %p140 = scmp.eq.s32.totalorder %s18, 2
      %p141 = scmp.ne.s32.totalorder %s136, %s138
      %p142 = scmp.eq.s32.totalorder %s18, 0
      %p143 = por %p141, %p142
      %p144 = scmp.ne.s32.totalorder %s136, %s138
      %p145 = scmp.eq.s32.totalorder %s23, 2
      %p146 = por %p144, %p145
      %p147 = scmp.ne.s32.totalorder %s138, %s139
      %p148 = scmp.eq.s32.totalorder %s23, 0
      %p149 = por %p147, %p148
      %p150 = scmp.ne.s32.totalorder %s138, %s139
      %p151 = scmp.eq.s32.totalorder %s24, 2
      %p152 = por %p150, %p151
      %p154 = scmp.ne.s32.totalorder %s139, %s153
      %p155 = scmp.eq.s32.totalorder %s24, 0
      %p156 = por %p154, %p155
      %s158 = sadd.s32 %s157, 1
      %p161 = scmp.eq.s32.totalorder %s18, 2
      %p162 = scmp.ne.s32.totalorder %s157, %s159
      %p163 = scmp.eq.s32.totalorder %s18, 0
      %p164 = por %p162, %p163
      %p165 = scmp.ne.s32.totalorder %s157, %s159
      %p166 = scmp.eq.s32.totalorder %s23, 2
      %p167 = por %p165, %p166
      %p168 = scmp.ne.s32.totalorder %s159, %s160
      %p169 = scmp.eq.s32.totalorder %s23, 0
      %p170 = por %p168, %p169
      %p171 = scmp.ne.s32.totalorder %s159, %s160
      %p172 = scmp.eq.s32.totalorder %s24, 2
      %p173 = por %p171, %p172
      %p175 = scmp.ne.s32.totalorder %s160, %s174
      %p176 = scmp.eq.s32.totalorder %s24, 0
      %p177 = por %p175, %p176
      %s178 = ssub.s32 %s18, %s25
      %p179 = scmp.eq.s32.totalorder %s178, 0
      %s181 = sadd.s32 %s180, 1
      %s182 = scalar_select %p179, %s180, %s181
      %p185 = pneg %p179
      %p186 = scmp.eq.s32.totalorder %s18, 2
      %p187 = por %p185, %p186
      %p188 = scmp.ne.s32.totalorder %s180, %s183
      %p189 = scmp.eq.s32.totalorder %s18, 0
      %p190 = por %p188, %p189
      %p191 = scmp.ne.s32.totalorder %s180, %s183
      %p192 = scmp.eq.s32.totalorder %s23, 2
      %p193 = por %p191, %p192
      %p194 = scmp.ne.s32.totalorder %s183, %s184
      %p195 = scmp.eq.s32.totalorder %s23, 0
      %p196 = por %p194, %p195
      %p197 = scmp.ne.s32.totalorder %s183, %s184
      %p198 = scmp.eq.s32.totalorder %s24, 2
      %p199 = por %p197, %p198
      %p201 = scmp.ne.s32.totalorder %s184, %s200
      %p202 = scmp.eq.s32.totalorder %s24, 0
      %p203 = por %p201, %p202
      %p204 = scmp.le.s32.totalorder 1, %s18
      %p205 = scmp.lt.s32.totalorder %s18, 4
      %p206 = pnand %p204, %p205
      %p207 = pneg %p206
      // Predicated region
      $region9: #{tpu_custom_call.1} parent=5 // pred_check
        _
      $region10: #{tpu_custom_call.1} parent=5 // pred_check_branch
        %209 = sbr.rel (%p206) target = $region12
      $region11: #{tpu_custom_call.1} parent=5 // pred_region
        %s210 = ssub.s32 %s18, 1
        // Predicated region
        $region13: #{tpu_custom_call.1} parent=11 // pred_check
          %p211 = pneg %p65
        $region14: #{tpu_custom_call.1} parent=11 // pred_check_branch
          %213 = sbr.rel (%p211) target = $region16
        $region15: #{tpu_custom_call.1} parent=11 // pred_region
          _
        $region16: #{tpu_custom_call.1} parent=11 // pred_fallthru
          _
        // Predicated region
        $region17: #{tpu_custom_call.1} parent=11 // pred_check
          %p214 = pneg %p86
        $region18: #{tpu_custom_call.1} parent=11 // pred_check_branch
          %216 = sbr.rel (%p214) target = $region20
        $region19: #{tpu_custom_call.1} parent=11 // pred_region
          _
        $region20: #{tpu_custom_call.1} parent=11 // pred_fallthru
          _
        // Predicated region
        $region21: #{tpu_custom_call.1} parent=11 // pred_check
          %p217 = pneg %p107
        $region22: #{tpu_custom_call.1} parent=11 // pred_check_branch
          %219 = sbr.rel (%p217) target = $region24
        $region23: #{tpu_custom_call.1} parent=11 // pred_region
          _
        $region24: #{tpu_custom_call.1} parent=11 // pred_fallthru
          _
        // Predicated region
        $region25: #{tpu_custom_call.1} parent=11 // pred_check
          %p220 = pneg %p128
        $region26: #{tpu_custom_call.1} parent=11 // pred_check_branch
          %222 = sbr.rel (%p220) target = $region28
        $region27: #{tpu_custom_call.1} parent=11 // pred_region
          _
        $region28: #{tpu_custom_call.1} parent=11 // pred_fallthru
          _
        // Predicated region
        $region29: #{tpu_custom_call.1} parent=11 // pred_check
          %p223 = pneg %p149
        $region30: #{tpu_custom_call.1} parent=11 // pred_check_branch
          %225 = sbr.rel (%p223) target = $region32
        $region31: #{tpu_custom_call.1} parent=11 // pred_region
          _
        $region32: #{tpu_custom_call.1} parent=11 // pred_fallthru
          _
        // Predicated region
        $region33: #{tpu_custom_call.1} parent=11 // pred_check
          %p226 = pneg %p170
        $region34: #{tpu_custom_call.1} parent=11 // pred_check_branch
          %228 = sbr.rel (%p226) target = $region36
        $region35: #{tpu_custom_call.1} parent=11 // pred_region
          _
        $region36: #{tpu_custom_call.1} parent=11 // pred_fallthru
          _
      $region12: #{tpu_custom_call.1} parent=5 // pred_fallthru
        _
      %p229 = scmp.lt.s32.totalorder %s18, 3
      // Predicated region
      $region37: #{tpu_custom_call.1} parent=5 // pred_check
        %p230 = pneg %p229
      $region38: #{tpu_custom_call.1} parent=5 // pred_check_branch
        %232 = sbr.rel (%p230) target = $region40
      $region39: #{tpu_custom_call.1} parent=5 // pred_region
        // Predicated region
        $region41: #{tpu_custom_call.1} parent=39 // pred_check
          %p233 = pneg %p38
        $region42: #{tpu_custom_call.1} parent=39 // pred_check_branch
          %235 = sbr.rel (%p233) target = $region44
        $region43: #{tpu_custom_call.1} parent=39 // pred_region
          %p236 = scmp.lt.s32.totalorder %s18, 2
          %s237 = scalar_select %p236, %s18, 2
          %s238 = scalar_lea.vmem %s0, %s237
        $region44: #{tpu_custom_call.1} parent=39 // pred_fallthru
          _
      $region40: #{tpu_custom_call.1} parent=5 // pred_fallthru
        _
      %p239 = scmp.le.s32.totalorder 1, %s18
      %p240 = scmp.lt.s32.totalorder %s18, 4
      %p241 = pnand %p239, %p240
      %p242 = pneg %p241
      // Predicated region
      $region45: #{tpu_custom_call.1} parent=5 // pred_check
        _
      $region46: #{tpu_custom_call.1} parent=5 // pred_check_branch
        %244 = sbr.rel (%p241) target = $region48
      $region47: #{tpu_custom_call.1} parent=5 // pred_region
        %s245 = ssub.s32 %s18, 1
        %p246 = scmp.lt.s32.totalorder %s23, 2
        %s247 = scalar_select %p246, %s23, 2
        %s248 = scalar_lea.vmem %s0, %s247
        %p249 = pneg %p44
        %p250 = pneg %p41
        %p251 = pneg %p65
        %p252 = pneg %p62
        %p253 = pneg %p86
        %p254 = pneg %p83
        %p255 = pneg %p107
        %p256 = pneg %p104
        %p257 = pneg %p128
        %p258 = pneg %p125
        %p259 = pneg %p149
        %p260 = pneg %p146
        %p261 = pneg %p170
        %p262 = pneg %p167
        %p263 = pneg %p196
        %p264 = pneg %p193
        %s265 = sand.u32 %s183, 1
        %s266 = scalar_lea.sflag [#allocation4], %s265
        %s267 = sand.u32 %s183, 1
        %s268 = scalar_lea.vmem [#allocation3], %s267
        %p269 = scmp.lt.s32.totalorder %s23, 2
        %s270 = scalar_select %p269, %s23, 2
        %s271 = scalar_lea.vmem %s0, %s270
        %v272 = vld [vmem:[%s271] sm:$0x1]
        %v273 = vld [vmem:[%s1] sm:$0xff]
        %v274 = vld [vmem:[%s1 + $0x8] sm:$0xff]
        %v275 = vld [vmem:[%s1 + $0x10] sm:$0xff]
        %v276 = vld [vmem:[%s1 + $0x18] sm:$0xff]
        %278 = vset.pattern.permute.xlu0 0
        %279 = vperm.xlu0 %278, %v273
        %v280 = vpop.permute.xlu0 %279
        %283 = vset.pattern.permute.xlu0 0
        %284 = vperm.xlu0 %283, %v274
        %v285 = vpop.permute.xlu0 %284
        %288 = vset.pattern.permute.xlu0 0
        %289 = vperm.xlu0 %288, %v275
        %v290 = vpop.permute.xlu0 %289
        %293 = vset.pattern.permute.xlu0 0
        %294 = vperm.xlu0 %293, %v276
        %v295 = vpop.permute.xlu0 %294
        %v298 = vlaneseq
        %v299 = vshrl.u32 %v298, 7
        %v300 = vsub.s32 0, %v299
        %v301 = vrot.slane %v272, %v300
        %v303 = vmul.f32 %v280, %v301
        %v304 = vmul.f32 %v285, %v301
        %v305 = vmul.f32 %v290, %v301
        %v306 = vmul.f32 %v295, %v301
        %v307 = vld [vmem:[%s2] sm:$0xff]
        %v308 = vld [vmem:[%s2 + $0x8] sm:$0xff]
        %v309 = vld [vmem:[%s2 + $0x10] sm:$0xff]
        %v310 = vld [vmem:[%s2 + $0x18] sm:$0xff]
        %312 = vset.pattern.permute.xlu0 0
        %313 = vperm.xlu0 %312, %v307
        %v314 = vpop.permute.xlu0 %313
        %317 = vset.pattern.permute.xlu0 0
        %318 = vperm.xlu0 %317, %v308
        %v319 = vpop.permute.xlu0 %318
        %322 = vset.pattern.permute.xlu0 0
        %323 = vperm.xlu0 %322, %v309
        %v324 = vpop.permute.xlu0 %323
        %327 = vset.pattern.permute.xlu0 0
        %328 = vperm.xlu0 %327, %v310
        %v329 = vpop.permute.xlu0 %328
        %v331 = vadd.f32 %v303, %v314
        %v332 = vadd.f32 %v304, %v319
        %v333 = vadd.f32 %v305, %v324
        %v334 = vadd.f32 %v306, %v329
        %v335 = vtanh.pop %v331
        %v336 = vtanh.pop %v332
        %v337 = vtanh.pop %v333
        %v338 = vtanh.pop %v334
        %v339 = vld [vmem:[%s3] sm:$0xff]
        %v340 = vld [vmem:[%s3 + $0x8] sm:$0xff]
        %v341 = vld [vmem:[%s3 + $0x10] sm:$0xff]
        %v342 = vld [vmem:[%s3 + $0x18] sm:$0xff]
        %v343 = vld [vmem:[%s4] sm:$0xff]
        %v344 = vld [vmem:[%s4 + $0x8] sm:$0xff]
        %v345 = vld [vmem:[%s4 + $0x10] sm:$0xff]
        %v346 = vld [vmem:[%s4 + $0x18] sm:$0xff]
        %348 = vset.pattern.permute.xlu0 0
        %349 = vperm.xlu0 %348, %v343
        %v350 = vpop.permute.xlu0 %349
        %353 = vset.pattern.permute.xlu0 0
        %354 = vperm.xlu0 %353, %v344
        %v355 = vpop.permute.xlu0 %354
        %358 = vset.pattern.permute.xlu0 0
        %359 = vperm.xlu0 %358, %v345
        %v360 = vpop.permute.xlu0 %359
        %363 = vset.pattern.permute.xlu0 0
        %364 = vperm.xlu0 %363, %v346
        %v365 = vpop.permute.xlu0 %364
        %vm367 = vcmask 261120
        %v369 = vsel %vm367, %v339, 0
        %v372 = vsel %vm367, %v340, 0
        %v375 = vsel %vm367, %v341, 0
        %v378 = vsel %vm367, %v342, 0
        %380 = vmatprep.subr.mxu0 0.0
        %381 = vmatpush1.msra.mxu0 %v335
        %382 = vmatprep.subr.mxu0 0.0
        %383 = vmatpush1.msra.mxu0 %v336
        %384 = vmatprep.subr.mxu0 0.0
        %385 = vmatpush1.msra.mxu0 %v337
        %386 = vmatprep.subr.mxu0 0.0
        %387 = vmatpush1.msra.mxu0 %v338
        %388 = vmatprep.subr.mxu0 0.0
        %389 = vmatpush1.msra.mxu0 0.0
        %390 = vmatprep.subr.mxu0 0.0
        %391 = vmatpush1.msra.mxu0 0.0
        %392 = vmatprep.subr.mxu0 0.0
        %393 = vmatpush1.msra.mxu0 0.0
        %394 = vmatprep.subr.mxu0 0.0
        %395 = vmatpush1.msra.mxu0 0.0
        %396 = vmatprep.subr.mxu0 0.0
        %397 = vmatpush1.msra.mxu0 0.0
        %398 = vmatprep.subr.mxu0 0.0
        %399 = vmatpush1.msra.mxu0 0.0
        %400 = vmatprep.subr.mxu0 0.0
        %401 = vmatpush1.msra.mxu0 0.0
        %402 = vmatprep.subr.mxu0 0.0
        %403 = vmatpush1.msra.mxu0 0.0
        %404 = vmatprep.subr.mxu0 0.0
        %405 = vmatpush1.msra.mxu0 0.0
        %406 = vmatprep.subr.mxu0 0.0
        %407 = vmatpush1.msra.mxu0 0.0
        %408 = vmatprep.subr.mxu0 0.0
        %409 = vmatpush1.msra.mxu0 0.0
        %410 = vmatprep.subr.mxu0 0.0
        %411 = vmatpush1.msra.mxu0 0.0
        %412 = vmatprep.subr.mxu0 0.0
        %413 = vmatpush1.msra.mxu0 0.0
        %414 = vmatprep.subr.mxu0 0.0
        %415 = vmatpush1.msra.mxu0 0.0
        %416 = vmatprep.subr.mxu0 0.0
        %417 = vmatpush1.msra.mxu0 0.0
        %418 = vmatprep.subr.mxu0 0.0
        %419 = vmatpush1.msra.mxu0 0.0
        %420 = vmatprep.subr.mxu0 0.0
        %421 = vmatpush1.msra.mxu0 0.0
        %422 = vmatprep.subr.mxu0 0.0
        %423 = vmatpush1.msra.mxu0 0.0
        %424 = vmatprep.subr.mxu0 0.0
        %425 = vmatpush1.msra.mxu0 0.0
        %426 = vmatprep.subr.mxu0 0.0
        %427 = vmatpush1.msra.mxu0 0.0
        %428 = vmatprep.subr.mxu0 0.0
        %429 = vmatpush1.msra.mxu0 0.0
        %430 = vmatprep.subr.mxu0 0.0
        %431 = vmatpush1.msra.mxu0 0.0
        %432 = vmatprep.subr.mxu0 0.0
        %433 = vmatpush1.msra.mxu0 0.0
        %434 = vmatprep.subr.mxu0 0.0
        %435 = vmatpush1.msra.mxu0 0.0
        %436 = vmatprep.subr.mxu0 0.0
        %437 = vmatpush1.msra.mxu0 0.0
        %438 = vmatprep.subr.mxu0 0.0
        %439 = vmatpush1.msra.mxu0 0.0
        %440 = vmatprep.subr.mxu0 0.0
        %441 = vmatpush1.msra.mxu0 0.0
        %442 = vmatprep.subr.mxu0 0.0
        %443 = vmatpush1.msra.mxu0 0.0
        %444 = vmatprep.mubr.f32.mxu0 0.0
        %445 = vmatmul.mubr.f32.gmra.mrb[0].mxu0 %v369
        %v446 = vpop.f32.mrb[0].mxu0
        %v447 = vadd.f32 %v350, %v446
        %v448 = vpop.f32.mrb[0].mxu0
        %449 = vmatprep.mubr.f32.mxu0 0.0
        %450 = vmatmul.mubr.f32.gmra.mrb[0].mxu0 %v372
        %v451 = vpop.f32.mrb[0].mxu0
        %v452 = vadd.f32 %v355, %v451
        %v453 = vpop.f32.mrb[0].mxu0
        %454 = vmatprep.mubr.f32.mxu0 0.0
        %455 = vmatmul.mubr.f32.gmra.mrb[0].mxu0 %v375
        %v456 = vpop.f32.mrb[0].mxu0
        %v457 = vadd.f32 %v360, %v456
        %v458 = vpop.f32.mrb[0].mxu0
        %459 = vmatprep.mubr.f32.mxu0 0.0
        %460 = vmatmul.mubr.f32.gmra.mrb[0].mxu0 %v378
        %v461 = vpop.f32.mrb[0].mxu0
        %v462 = vadd.f32 %v365, %v461
        %v463 = vpop.f32.mrb[0].mxu0
        %464 = vdwg.mxu0
        %v465 = vtanh.pop %v447
        %v466 = vtanh.pop %v452
        %v467 = vtanh.pop %v457
        %v468 = vtanh.pop %v462
        %v469 = vld [vmem:[%s5] sm:$0xff]
        %v470 = vld [vmem:[%s5 + $0x8] sm:$0xff]
        %v471 = vld [vmem:[%s5 + $0x10] sm:$0xff]
        %v472 = vld [vmem:[%s5 + $0x18] sm:$0xff]
        %474 = vset.pattern.permute.xlu0 0
        %475 = vperm.xlu0 %474, %v469
        %v476 = vpop.permute.xlu0 %475
        %479 = vset.pattern.permute.xlu0 0
        %480 = vperm.xlu0 %479, %v470
        %v481 = vpop.permute.xlu0 %480
        %484 = vset.pattern.permute.xlu0 0
        %485 = vperm.xlu0 %484, %v471
        %v486 = vpop.permute.xlu0 %485
        %489 = vset.pattern.permute.xlu0 0
        %490 = vperm.xlu0 %489, %v472
        %v491 = vpop.permute.xlu0 %490
        %v493 = vmul.f32 %v476, %v465
        %v494 = vmul.f32 %v481, %v466
        %v495 = vmul.f32 %v486, %v467
        %v496 = vmul.f32 %v491, %v468
        %v497 = vadd.f32 %v493, %v494
        %v498 = vadd.f32 %v497, %v495
        %v499 = vadd.f32 %v498, %v496
        %v500 = vrot.slane %v499, 4
        %v501 = vadd.f32 %v499, %v500
        %v502 = vrot.slane %v501, 2
        %v503 = vadd.f32 %v501, %v502
        %v504 = vrot.slane %v503, 1
        %v505 = vadd.f32 %v503, %v504
        %v506 = vld [vmem:[#allocation2] sm:$0x1]
        %508 = vset.pattern.permute.xlu0 0
        %509 = vperm.xlu0 %508, %v506
        %v510 = vpop.permute.xlu0 %509
        %v512 = vlaneseq
        %v513 = vshrl.u32 %v512, 7
        %v514 = vsub.s32 0, %v513
        %v515 = vrot.slane %v510, %v514
        %v516 = vadd.f32 %v505, %v515
        %517 = vst [vmem:[%s268] sm:$0x1] %v516
        %s518 = sand.u32 %s183, 1
        %s519 = scalar_lea.sflag [#allocation4], %s518
        %s520 = sand.u32 %s183, 1
        %s521 = scalar_lea.vmem [#allocation3], %s520
        // Predicated region
        $region49: #{tpu_custom_call.1} parent=47 // pred_check
          %p522 = pneg %p193
        $region50: #{tpu_custom_call.1} parent=47 // pred_check_branch
          %524 = sbr.rel (%p522) target = $region52
        $region51: #{tpu_custom_call.1} parent=47 // pred_region
          %s526 = ssub.s32 16, 16
          %527 = vsyncadd %s519, %s526
          %s528 = smul.addr %s23, 16
          %s529 = scalar_lea.hbm %s7, %s528
          %s531 = sshll.u32 %s521, 4
          %s532 = int_to_ptr.vmem [resolvable:$true] %s531
          %534 = dma.vmem_to_hbm [thread:$0]  %s532, 16, %s529, %s519
        $region52: #{tpu_custom_call.1} parent=47 // pred_fallthru
          _
      $region48: #{tpu_custom_call.1} parent=5 // pred_fallthru
        _
      %p535 = scmp.le.s32.totalorder 2, %s18
      // Predicated region
      $region53: #{tpu_custom_call.1} parent=5 // pred_check
        %p536 = pneg %p535
      $region54: #{tpu_custom_call.1} parent=5 // pred_check_branch
        %538 = sbr.rel (%p536) target = $region56
      $region55: #{tpu_custom_call.1} parent=5 // pred_region
        %s539 = ssub.s32 %s18, 2
        // Predicated region
        $region57: #{tpu_custom_call.1} parent=55 // pred_check
          %p540 = pneg %p199
        $region58: #{tpu_custom_call.1} parent=55 // pred_check_branch
          %542 = sbr.rel (%p540) target = $region60
        $region59: #{tpu_custom_call.1} parent=55 // pred_region
          %s543 = sand.u32 %s184, 1
          %s544 = scalar_lea.sflag [#allocation4], %s543
          %s545 = sand.u32 %s184, 1
          %s546 = scalar_lea.vmem [#allocation3], %s545
          %547 = dma.done %s544, 16
        $region60: #{tpu_custom_call.1} parent=55 // pred_fallthru
          _
      $region56: #{tpu_custom_call.1} parent=5 // pred_fallthru
        _
    $region6: #{tpu_custom_call.1} parent=1 // loop_footer
      %s22 = sadd.s32 1, %s18
    $region7: #{tpu_custom_call.1} parent=1 // loop_footer_branch
      %17 = sbr.rel target = $region3
    $region8: #{tpu_custom_call.1} parent=1 // loop_exit
      _
    %548 = vsyncpa [#allocation4], 1
    %s549 = scalar_lea.sflag [#allocation4], 1
    %550 = vsyncpa %s549, 1

</llo_original>
